<compile_context>
chip_gen: v5e
topology: v5e:2x2
jax: 0.10.0
libtpu: 0.0.40
codegen_flags: <defaults>
</compile_context>

<pallas_src>
import functools

import jax
import jax.numpy as jnp
from jax.experimental import pallas as pl
from jax.experimental.pallas import tpu as pltpu


def _round_up(x, m):
    return (x + m - 1) // m * m


def dueling_kernel(n_actions, x_ref, w1_ref, w2_ref, w3_ref, wh_ref, wo_ref,
                   b1_ref, b2_ref, b3_ref, bh_ref, bo_ref, out_ref):
    x = x_ref[...]  # (TB, encoded_dim), f32 or bf16

    # ---- shared MLP: Linear -> ReLU -> Linear -> ReLU -> Linear ----
    h = jnp.dot(x.astype(jnp.bfloat16), w1_ref[...],
                preferred_element_type=jnp.float32) + b1_ref[...]
    h = jnp.maximum(h, 0.0)
    h = jnp.dot(h.astype(jnp.bfloat16), w2_ref[...],
                preferred_element_type=jnp.float32) + b2_ref[...]
    h = jnp.maximum(h, 0.0)
    s = jnp.dot(h.astype(jnp.bfloat16), w3_ref[...],
                preferred_element_type=jnp.float32) + b3_ref[...]

    # ---- F.relu(shared(x)) ----
    t = jnp.maximum(s, 0.0)

    # ---- fused pi/v hidden layer: t @ [wp1 | wv1] -> [a_pi | a_v], ReLU ----
    a = jnp.dot(t.astype(jnp.bfloat16), wh_ref[...],
                preferred_element_type=jnp.float32) + bh_ref[...]
    a = jnp.maximum(a, 0.0)

    # ---- fused pi/v output layer (block-diagonal, zero-padded to 128 lanes) ----
    # z[:, :n_actions] = adv, z[:, n_actions] = v, z[:, n_actions+1:] = exact zeros
    z = jnp.dot(a.astype(jnp.bfloat16), wo_ref[...],
                preferred_element_type=jnp.float32) + bo_ref[...]

    # ---- dueling combine: v + (adv - mean(adv)); no masks needed ----
    adv = z[:, :n_actions]                       # (TB, n_actions)
    v = z[:, n_actions:n_actions + 1]            # (TB, 1)
    adv_mean = jnp.sum(adv, axis=1, keepdims=True) * (1.0 / n_actions)
    out_ref[...] = (adv - adv_mean + v).astype(out_ref.dtype)


def pack_params(params, n_actions):
    """Fuse head weights, cast weights to bf16, keep biases in f32."""
    sd = params["w3"].shape[1]
    hh = 2 * sd
    out_pad = _round_up(n_actions + 1, 128)

    # fused pi/v hidden weight: (sd, 2*sd)
    wh = jnp.concatenate([params["wp1"], params["wv1"]], axis=1)

    # fused pi/v output weight: block-diagonal, padded to out_pad lanes (exact zeros)
    wo = jnp.zeros((hh, out_pad), jnp.float32)
    wo = wo.at[:sd, :n_actions].set(params["wp2"])
    wo = wo.at[sd:, n_actions:n_actions + 1].set(params["wv2"])

    # fused pi/v hidden bias and padded output bias
    bh = jnp.concatenate([params["bp1"], params["bv1"]], axis=1)          # (1, 2*sd)
    bo = jnp.zeros((1, out_pad), jnp.float32)
    bo = bo.at[0, :n_actions].set(params["bp2"][0])
    bo = bo.at[0, n_actions:n_actions + 1].set(params["bv2"][0])

    bf16 = jnp.bfloat16
    return {
        "w1": params["w1"].astype(bf16),
        "w2": params["w2"].astype(bf16),
        "w3": params["w3"].astype(bf16),
        "wh": wh.astype(bf16),
        "wo": wo.astype(bf16),
        "b1": params["b1"],
        "b2": params["b2"],
        "b3": params["b3"],
        "bh": bh,
        "bo": bo,
        "n_actions": n_actions,
    }


def dueling_net_forward(x, packed, *, tb=512):
    """x: (B, encoded_dim) float32 or bfloat16. packed: output of pack_params.

    Returns (B, n_actions) float32 Q-values.
    """
    B, d_in = x.shape
    n_actions = packed["n_actions"]

    # Clamp tile to the (sublane-padded) batch so tiny batches don't move dead rows.
    b_up = _round_up(max(B, 1), 8)
    tb_eff = min(tb, b_up)
    # Keep >= 2 grid steps when each half is still >= 128 rows, so the "parallel"
    # batch axis can feed both TensorCores on v7x (neutral on v5e/v6e).
    if b_up >= 256 and b_up // tb_eff < 2:
        tb_eff = _round_up(-(-b_up // 2), 8)
    b_pad = _round_up(b_up, tb_eff)
    if b_pad != B:
        x = jnp.pad(x, ((0, b_pad - B), (0, 0)))
    grid = (b_pad // tb_eff,)

    def resident(arr):
        # whole array, constant block index -> stays in VMEM across grid steps
        # (weights/biases are tiny; skipping pl.Buffered(1) keeps lowering simple)
        return pl.BlockSpec(arr.shape, lambda i: (0, 0))

    kernel = functools.partial(dueling_kernel, n_actions)
    out = pl.pallas_call(
        kernel,
        # Narrow, contiguous output (full second dim): ~16x less HBM writeback than a
        # 128-lane padded f32 slab, and no lane-slicing pass in the wrapper.
        out_shape=jax.ShapeDtypeStruct((b_pad, n_actions), jnp.float32),
        grid=grid,
        in_specs=[
            pl.BlockSpec((tb_eff, d_in), lambda i: (i, 0)),   # activations: batch-tiled
            resident(packed["w1"]),
            resident(packed["w2"]),
            resident(packed["w3"]),
            resident(packed["wh"]),
            resident(packed["wo"]),
            resident(packed["b1"]),
            resident(packed["b2"]),
            resident(packed["b3"]),
            resident(packed["bh"]),
            resident(packed["bo"]),
        ],
        out_specs=pl.BlockSpec((tb_eff, n_actions), lambda i: (i, 0)),
        compiler_params=pltpu.CompilerParams(
            dimension_semantics=("parallel",),
        ),
    )(x, packed["w1"], packed["w2"], packed["w3"], packed["wh"], packed["wo"],
      packed["b1"], packed["b2"], packed["b3"], packed["bh"], packed["bo"])

    return out[:B] if b_pad != B else out


def init_params(key, encoded_dim, hidden_sizes, shared_dim, n_actions):
    """Deterministic synthetic params. Weights stored as (in, out) == torch W.T."""
    assert len(hidden_sizes) == 2, "this script instantiates hidden_sizes of length 2"
    h1, h2 = hidden_sizes
    dims = [
        ("w1", "b1", encoded_dim, h1),
        ("w2", "b2", h1, h2),
        ("w3", "b3", h2, shared_dim),
        ("wp1", "bp1", shared_dim, shared_dim),
        ("wp2", "bp2", shared_dim, n_actions),
        ("wv1", "bv1", shared_dim, shared_dim),
        ("wv2", "bv2", shared_dim, 1),
    ]
    params = {}
    keys = jax.random.split(key, len(dims))
    for k, (wn, bn, fin, fout) in zip(keys, dims):
        kw, kb = jax.random.split(k)
        bound = 1.0 / jnp.sqrt(jnp.float32(fin))  # torch.nn.Linear default init range
        params[wn] = jax.random.uniform(kw, (fin, fout), jnp.float32, -bound, bound)
        params[bn] = jax.random.uniform(kb, (1, fout), jnp.float32, -bound, bound)
    return params


def reference_forward(x, params):
    """Pure-JAX reference mirroring the PyTorch forward (bf16 dots, f32 accumulation)."""
    def lin(a, w, b):
        return jnp.dot(a.astype(jnp.bfloat16), w.astype(jnp.bfloat16),
                       preferred_element_type=jnp.float32) + b

    h = jnp.maximum(lin(x, params["w1"], params["b1"]), 0.0)
    h = jnp.maximum(lin(h, params["w2"], params["b2"]), 0.0)
    s = lin(h, params["w3"], params["b3"])
    t = jnp.maximum(s, 0.0)
    a = jnp.maximum(lin(t, params["wp1"], params["bp1"]), 0.0)
    adv = lin(a, params["wp2"], params["bp2"])
    vh = jnp.maximum(lin(t, params["wv1"], params["bv1"]), 0.0)
    v = lin(vh, params["wv2"], params["bv2"])
    return v + (adv - jnp.mean(adv, axis=1, keepdims=True))


if __name__ == "__main__":
    encoded_dim = 32
    hidden_sizes = [32, 32]
    shared_dim = 32
    n_actions = 8

    key = jax.random.PRNGKey(0)
    kx, kp, kx2 = jax.random.split(key, 3)
    params = init_params(kp, encoded_dim, hidden_sizes, shared_dim, n_actions)
    packed = pack_params(params, n_actions)

    # Case 1: tiny batch (tile clamps to 8 padded rows, single grid step).
    B = 2
    x = jax.random.normal(kx, (B, encoded_dim), dtype=jnp.float32)
    out = jax.block_until_ready(dueling_net_forward(x, packed))
    ref = reference_forward(x, params)
    assert out.shape == (B, n_actions)
    assert jnp.allclose(out, ref, atol=5e-3, rtol=5e-3), "mismatch vs pure-JAX reference (B=2)"

    # Case 2: non-multiple batch with a multi-step grid (exercises padding + pipeline).
    B2 = 20
    x2 = jax.random.normal(kx2, (B2, encoded_dim), dtype=jnp.float32)
    out2 = jax.block_until_ready(dueling_net_forward(x2, packed, tb=8))
    ref2 = reference_forward(x2, params)
    assert out2.shape == (B2, n_actions)
    assert jnp.allclose(out2, ref2, atol=5e-3, rtol=5e-3), "mismatch vs pure-JAX reference (B=20)"

    print("KERNEL_OK")
</pallas_src>

<mosaic_0001>
module attributes {stable_mosaic.version = 11 : i64} {
  func.func @dueling_kernel(%arg0: i32, %arg1: memref<8x32xf32, #tpu.memory_space<vmem>>, %arg2: memref<32x32xbf16, #tpu.memory_space<vmem>>, %arg3: memref<32x32xbf16, #tpu.memory_space<vmem>>, %arg4: memref<32x32xbf16, #tpu.memory_space<vmem>>, %arg5: memref<32x64xbf16, #tpu.memory_space<vmem>>, %arg6: memref<64x128xbf16, #tpu.memory_space<vmem>>, %arg7: memref<1x32xf32, #tpu.memory_space<vmem>>, %arg8: memref<1x32xf32, #tpu.memory_space<vmem>>, %arg9: memref<1x32xf32, #tpu.memory_space<vmem>>, %arg10: memref<1x64xf32, #tpu.memory_space<vmem>>, %arg11: memref<1x128xf32, #tpu.memory_space<vmem>>, %arg12: memref<8x8xf32, #tpu.memory_space<vmem>>) attributes {dimension_semantics = [#tpu.dimension_semantics<parallel>], iteration_bounds = array<i64: 1>, scalar_prefetch = 0 : i64, scratch_operands = 0 : i64, tpu.core_type = #tpu.core_type<tc>, window_params = [{transform_indices = @transform_0, window_bounds = array<i64: 8, 32>}, {pipeline_mode = #tpu.pipeline_mode<synchronous>, transform_indices = @transform_1, window_bounds = array<i64: 32, 32>}, {pipeline_mode = #tpu.pipeline_mode<synchronous>, transform_indices = @transform_2, window_bounds = array<i64: 32, 32>}, {pipeline_mode = #tpu.pipeline_mode<synchronous>, transform_indices = @transform_3, window_bounds = array<i64: 32, 32>}, {pipeline_mode = #tpu.pipeline_mode<synchronous>, transform_indices = @transform_4, window_bounds = array<i64: 32, 64>}, {pipeline_mode = #tpu.pipeline_mode<synchronous>, transform_indices = @transform_5, window_bounds = array<i64: 64, 128>}, {pipeline_mode = #tpu.pipeline_mode<synchronous>, transform_indices = @transform_6, window_bounds = array<i64: 1, 32>}, {pipeline_mode = #tpu.pipeline_mode<synchronous>, transform_indices = @transform_7, window_bounds = array<i64: 1, 32>}, {pipeline_mode = #tpu.pipeline_mode<synchronous>, transform_indices = @transform_8, window_bounds = array<i64: 1, 32>}, {pipeline_mode = #tpu.pipeline_mode<synchronous>, transform_indices = @transform_9, window_bounds = array<i64: 1, 64>}, {pipeline_mode = #tpu.pipeline_mode<synchronous>, transform_indices = @transform_10, window_bounds = array<i64: 1, 128>}, {transform_indices = @transform_11, window_bounds = array<i64: 8, 8>}]} {
    %c0 = arith.constant 0 : index
    %c0_0 = arith.constant 0 : index
    %0 = vector.load %arg1[%c0, %c0_0] : memref<8x32xf32, #tpu.memory_space<vmem>>, vector<8x32xf32>
    %1 = arith.truncf %0 : vector<8x32xf32> to vector<8x32xbf16>
    %c0_1 = arith.constant 0 : index
    %c0_2 = arith.constant 0 : index
    %2 = vector.load %arg2[%c0_1, %c0_2] : memref<32x32xbf16, #tpu.memory_space<vmem>>, vector<32x32xbf16>
    %cst = arith.constant dense<0.000000e+00> : vector<8x32xf32>
    %3 = tpu.matmul %1, %2, %cst {dimension_numbers = #tpu.dot_dimension_numbers<[1], [0], [0], [1], [0, 0, 1, 1], [], []>} : vector<8x32xbf16>, vector<32x32xbf16>, vector<8x32xf32> -> vector<8x32xf32>
    %c0_3 = arith.constant 0 : index
    %c0_4 = arith.constant 0 : index
    %4 = vector.load %arg7[%c0_3, %c0_4] : memref<1x32xf32, #tpu.memory_space<vmem>>, vector<1x32xf32>
    %5 = vector.broadcast %4 : vector<1x32xf32> to vector<8x32xf32>
    %6 = arith.addf %3, %5 : vector<8x32xf32>
    %cst_5 = arith.constant 0.000000e+00 : f32
    %7 = vector.broadcast %cst_5 : f32 to vector<8x32xf32>
    %8 = arith.maximumf %6, %7 : vector<8x32xf32>
    %9 = arith.truncf %8 : vector<8x32xf32> to vector<8x32xbf16>
    %c0_6 = arith.constant 0 : index
    %c0_7 = arith.constant 0 : index
    %10 = vector.load %arg3[%c0_6, %c0_7] : memref<32x32xbf16, #tpu.memory_space<vmem>>, vector<32x32xbf16>
    %cst_8 = arith.constant dense<0.000000e+00> : vector<8x32xf32>
    %11 = tpu.matmul %9, %10, %cst_8 {dimension_numbers = #tpu.dot_dimension_numbers<[1], [0], [0], [1], [0, 0, 1, 1], [], []>} : vector<8x32xbf16>, vector<32x32xbf16>, vector<8x32xf32> -> vector<8x32xf32>
    %c0_9 = arith.constant 0 : index
    %c0_10 = arith.constant 0 : index
    %12 = vector.load %arg8[%c0_9, %c0_10] : memref<1x32xf32, #tpu.memory_space<vmem>>, vector<1x32xf32>
    %13 = vector.broadcast %12 : vector<1x32xf32> to vector<8x32xf32>
    %14 = arith.addf %11, %13 : vector<8x32xf32>
    %cst_11 = arith.constant 0.000000e+00 : f32
    %15 = vector.broadcast %cst_11 : f32 to vector<8x32xf32>
    %16 = arith.maximumf %14, %15 : vector<8x32xf32>
    %17 = arith.truncf %16 : vector<8x32xf32> to vector<8x32xbf16>
    %c0_12 = arith.constant 0 : index
    %c0_13 = arith.constant 0 : index
    %18 = vector.load %arg4[%c0_12, %c0_13] : memref<32x32xbf16, #tpu.memory_space<vmem>>, vector<32x32xbf16>
    %cst_14 = arith.constant dense<0.000000e+00> : vector<8x32xf32>
    %19 = tpu.matmul %17, %18, %cst_14 {dimension_numbers = #tpu.dot_dimension_numbers<[1], [0], [0], [1], [0, 0, 1, 1], [], []>} : vector<8x32xbf16>, vector<32x32xbf16>, vector<8x32xf32> -> vector<8x32xf32>
    %c0_15 = arith.constant 0 : index
    %c0_16 = arith.constant 0 : index
    %20 = vector.load %arg9[%c0_15, %c0_16] : memref<1x32xf32, #tpu.memory_space<vmem>>, vector<1x32xf32>
    %21 = vector.broadcast %20 : vector<1x32xf32> to vector<8x32xf32>
    %22 = arith.addf %19, %21 : vector<8x32xf32>
    %cst_17 = arith.constant 0.000000e+00 : f32
    %23 = vector.broadcast %cst_17 : f32 to vector<8x32xf32>
    %24 = arith.maximumf %22, %23 : vector<8x32xf32>
    %25 = arith.truncf %24 : vector<8x32xf32> to vector<8x32xbf16>
    %c0_18 = arith.constant 0 : index
    %c0_19 = arith.constant 0 : index
    %26 = vector.load %arg5[%c0_18, %c0_19] : memref<32x64xbf16, #tpu.memory_space<vmem>>, vector<32x64xbf16>
    %cst_20 = arith.constant dense<0.000000e+00> : vector<8x64xf32>
    %27 = tpu.matmul %25, %26, %cst_20 {dimension_numbers = #tpu.dot_dimension_numbers<[1], [0], [0], [1], [0, 0, 1, 1], [], []>} : vector<8x32xbf16>, vector<32x64xbf16>, vector<8x64xf32> -> vector<8x64xf32>
    %c0_21 = arith.constant 0 : index
    %c0_22 = arith.constant 0 : index
    %28 = vector.load %arg10[%c0_21, %c0_22] : memref<1x64xf32, #tpu.memory_space<vmem>>, vector<1x64xf32>
    %29 = vector.broadcast %28 : vector<1x64xf32> to vector<8x64xf32>
    %30 = arith.addf %27, %29 : vector<8x64xf32>
    %cst_23 = arith.constant 0.000000e+00 : f32
    %31 = vector.broadcast %cst_23 : f32 to vector<8x64xf32>
    %32 = arith.maximumf %30, %31 : vector<8x64xf32>
    %33 = arith.truncf %32 : vector<8x64xf32> to vector<8x64xbf16>
    %c0_24 = arith.constant 0 : index
    %c0_25 = arith.constant 0 : index
    %34 = vector.load %arg6[%c0_24, %c0_25] : memref<64x128xbf16, #tpu.memory_space<vmem>>, vector<64x128xbf16>
    %cst_26 = arith.constant dense<0.000000e+00> : vector<8x128xf32>
    %35 = tpu.matmul %33, %34, %cst_26 {dimension_numbers = #tpu.dot_dimension_numbers<[1], [0], [0], [1], [0, 0, 1, 1], [], []>} : vector<8x64xbf16>, vector<64x128xbf16>, vector<8x128xf32> -> vector<8x128xf32>
    %c0_27 = arith.constant 0 : index
    %c0_28 = arith.constant 0 : index
    %36 = vector.load %arg11[%c0_27, %c0_28] : memref<1x128xf32, #tpu.memory_space<vmem>>, vector<1x128xf32>
    %37 = vector.broadcast %36 : vector<1x128xf32> to vector<8x128xf32>
    %38 = arith.addf %35, %37 : vector<8x128xf32>
    %39 = vector.extract_strided_slice %38 {offsets = [0, 0], sizes = [8, 8], strides = [1, 1]} : vector<8x128xf32> to vector<8x8xf32>
    %40 = vector.extract_strided_slice %38 {offsets = [0, 8], sizes = [8, 1], strides = [1, 1]} : vector<8x128xf32> to vector<8x1xf32>
    %cst_29 = arith.constant dense<0.000000e+00> : vector<8xf32>
    %41 = vector.multi_reduction <add>, %39, %cst_29 [1] : vector<8x8xf32> to vector<8xf32>
    %42 = vector.shape_cast %41 : vector<8xf32> to vector<8x1xf32>
    %cst_30 = arith.constant 1.250000e-01 : f32
    %43 = vector.broadcast %cst_30 : f32 to vector<8x1xf32>
    %44 = arith.mulf %42, %43 : vector<8x1xf32>
    %45 = vector.broadcast %44 : vector<8x1xf32> to vector<8x8xf32>
    %46 = arith.subf %39, %45 : vector<8x8xf32>
    %47 = vector.broadcast %40 : vector<8x1xf32> to vector<8x8xf32>
    %48 = arith.addf %46, %47 : vector<8x8xf32>
    %c0_31 = arith.constant 0 : index
    %c0_32 = arith.constant 0 : index
    %49 = vector.load %arg12[%c0_31, %c0_32] : memref<8x8xf32, #tpu.memory_space<vmem>>, vector<8x8xf32>
    tpu.vector_store %arg12[%c0_31, %c0_32], %48 {strides = array<i32>} : memref<8x8xf32, #tpu.memory_space<vmem>>, vector<8x8xf32>,
    return
  }
  func.func @transform_0(%arg0: i32) -> (i32, i32) {
    %c0_i32 = arith.constant 0 : i32
    %c0_i32_0 = arith.constant 0 : i32
    return %arg0, %c0_i32 : i32, i32
  }
  func.func @transform_1(%arg0: i32) -> (i32, i32) {
    %c0_i32 = arith.constant 0 : i32
    %c0_i32_0 = arith.constant 0 : i32
    %c0_i32_1 = arith.constant 0 : i32
    return %c0_i32, %c0_i32_0 : i32, i32
  }
  func.func @transform_2(%arg0: i32) -> (i32, i32) {
    %c0_i32 = arith.constant 0 : i32
    %c0_i32_0 = arith.constant 0 : i32
    %c0_i32_1 = arith.constant 0 : i32
    return %c0_i32, %c0_i32_0 : i32, i32
  }
  func.func @transform_3(%arg0: i32) -> (i32, i32) {
    %c0_i32 = arith.constant 0 : i32
    %c0_i32_0 = arith.constant 0 : i32
    %c0_i32_1 = arith.constant 0 : i32
    return %c0_i32, %c0_i32_0 : i32, i32
  }
  func.func @transform_4(%arg0: i32) -> (i32, i32) {
    %c0_i32 = arith.constant 0 : i32
    %c0_i32_0 = arith.constant 0 : i32
    %c0_i32_1 = arith.constant 0 : i32
    return %c0_i32, %c0_i32_0 : i32, i32
  }
  func.func @transform_5(%arg0: i32) -> (i32, i32) {
    %c0_i32 = arith.constant 0 : i32
    %c0_i32_0 = arith.constant 0 : i32
    %c0_i32_1 = arith.constant 0 : i32
    return %c0_i32, %c0_i32_0 : i32, i32
  }
  func.func @transform_6(%arg0: i32) -> (i32, i32) {
    %c0_i32 = arith.constant 0 : i32
    %c0_i32_0 = arith.constant 0 : i32
    %c0_i32_1 = arith.constant 0 : i32
    return %c0_i32, %c0_i32_0 : i32, i32
  }
  func.func @transform_7(%arg0: i32) -> (i32, i32) {
    %c0_i32 = arith.constant 0 : i32
    %c0_i32_0 = arith.constant 0 : i32
    %c0_i32_1 = arith.constant 0 : i32
    return %c0_i32, %c0_i32_0 : i32, i32
  }
  func.func @transform_8(%arg0: i32) -> (i32, i32) {
    %c0_i32 = arith.constant 0 : i32
    %c0_i32_0 = arith.constant 0 : i32
    %c0_i32_1 = arith.constant 0 : i32
    return %c0_i32, %c0_i32_0 : i32, i32
  }
  func.func @transform_9(%arg0: i32) -> (i32, i32) {
    %c0_i32 = arith.constant 0 : i32
    %c0_i32_0 = arith.constant 0 : i32
    %c0_i32_1 = arith.constant 0 : i32
    return %c0_i32, %c0_i32_0 : i32, i32
  }
  func.func @transform_10(%arg0: i32) -> (i32, i32) {
    %c0_i32 = arith.constant 0 : i32
    %c0_i32_0 = arith.constant 0 : i32
    %c0_i32_1 = arith.constant 0 : i32
    return %c0_i32, %c0_i32_0 : i32, i32
  }
  func.func @transform_11(%arg0: i32) -> (i32, i32) {
    %c0_i32 = arith.constant 0 : i32
    %c0_i32_0 = arith.constant 0 : i32
    return %arg0, %c0_i32 : i32, i32
  }
}

</mosaic_0001>

<llo_original>
// kernel: tpu_custom_call.1
$region0: #{tpu_custom_call.1}
  #allocation0 [shape = 'u32[]', space=smem, size = 0x4, offset = 0x4, fixed_abs, tag = 'smem constant byte address 0x4 - core index']
  #allocation1 [shape = 'u32[72,128]{1,0:T(1,128)}', space=vmem, size = 0x9000, scoped, tag = 'internal scratch']
  %s0 = inlined_call_operand.hbm [shape: f32[8,32], index: 0, kind: input, shape index: {}]
  %s1 = inlined_call_operand.hbm [shape: bf16[32,32], index: 1, kind: input, shape index: {}]
  %s2 = inlined_call_operand.hbm [shape: bf16[32,32], index: 2, kind: input, shape index: {}]
  %s3 = inlined_call_operand.hbm [shape: bf16[32,32], index: 3, kind: input, shape index: {}]
  %s4 = inlined_call_operand.hbm [shape: bf16[32,64], index: 4, kind: input, shape index: {}]
  %s5 = inlined_call_operand.hbm [shape: bf16[64,128], index: 5, kind: input, shape index: {}]
  %s6 = inlined_call_operand.vmem [shape: f32[1,32], index: 6, kind: input, shape index: {}]
  %s7 = inlined_call_operand.vmem [shape: f32[1,32], index: 7, kind: input, shape index: {}]
  %s8 = inlined_call_operand.vmem [shape: f32[1,32], index: 8, kind: input, shape index: {}]
  %s9 = inlined_call_operand.vmem [shape: f32[1,64], index: 9, kind: input, shape index: {}]
  %s10 = inlined_call_operand.vmem [shape: f32[1,128], index: 10, kind: input, shape index: {}]
  %s11 = inlined_call_operand.hbm [shape: f32[8,8], index: 11, kind: output, shape index: {}]
  %s12 = sld [smem:[#allocation0]]
  $region78: #{tpu_custom_call.1} parent=0
    _
  %s14 = ssub.s32 1, %s12
  %s15 = scalar_select 0, %s14, %s12
  $region1: #{tpu_custom_call.1} parent=0
    #allocation2 [shape = 'u8[4096]{0}', space=vmem, size = 0x1000, scoped, tag = 'input window, operand 0, single buffered']
    #allocation3 [shape = 's32[1]{0}', space=sflag, size = 0x4, scoped, tag = 'scoped memory for tpu_custom_call.1']
    #allocation4 [shape = 's32[1]{0}', space=sflag, size = 0x4, scoped, tag = 'scoped memory for tpu_custom_call.1']
    #allocation5 [shape = 'u8[8192]{0}', space=vmem, size = 0x2000, scoped, tag = 'input window, operand 1, single buffered']
    #allocation6 [shape = 's32[1]{0}', space=sflag, size = 0x4, scoped, tag = 'scoped memory for tpu_custom_call.1']
    #allocation7 [shape = 'u8[8192]{0}', space=vmem, size = 0x2000, scoped, tag = 'input window, operand 2, single buffered']
    #allocation8 [shape = 'u8[8192]{0}', space=vmem, size = 0x2000, scoped, tag = 'input window, operand 3, single buffered']
    #allocation9 [shape = 's32[1]{0}', space=sflag, size = 0x4, scoped, tag = 'scoped memory for tpu_custom_call.1']
    #allocation10 [shape = 'u8[8192]{0}', space=vmem, size = 0x2000, scoped, tag = 'input window, operand 4, single buffered']
    #allocation11 [shape = 'u8[16384]{0}', space=vmem, size = 0x4000, scoped, tag = 'input window, operand 5, single buffered']
    #allocation12 [shape = 's32[1]{0}', space=sflag, size = 0x4, scoped, tag = 'scoped memory for tpu_custom_call.1']
    #allocation13 [shape = 'u8[4096]{0}', space=vmem, size = 0x1000, scoped, tag = 'output window, operand 0, single buffered']
    %16 = vsyncpa [#allocation3], 0
    %17 = vsyncpa [#allocation6], 0
    %18 = vsyncpa [#allocation9], 0
    %19 = vsyncpa [#allocation12], 0
    %20 = vsyncpa [#allocation4], 0
    // Predicated region
    $region2: #{tpu_custom_call.1} parent=1 // pred_check
      _
    $region3: #{tpu_custom_call.1} parent=1 // pred_check_branch
      %22 = sbr.rel (0) target = $region5
    $region4: #{tpu_custom_call.1} parent=1 // pred_region
      %24 = vsyncadd [#allocation3], 0
      %s26 = sshll.u32 %s0, 4
      %s27 = int_to_ptr.hbm [resolvable:$true] %s26
      %s28 = sshll.u32 [#allocation2], 4
      %s29 = int_to_ptr.vmem [resolvable:$true] %s28
      %31 = dma.hbm_to_vmem [thread:$0]  %s27, 128, %s29, [#allocation3]
    $region5: #{tpu_custom_call.1} parent=1 // pred_fallthru
      _
    // Predicated region
    $region6: #{tpu_custom_call.1} parent=1 // pred_check
      _
    $region7: #{tpu_custom_call.1} parent=1 // pred_check_branch
      %33 = sbr.rel (0) target = $region9
    $region8: #{tpu_custom_call.1} parent=1 // pred_region
      %35 = vsyncadd [#allocation6], 0
      %s36 = sshll.u32 %s1, 4
      %s37 = int_to_ptr.hbm [resolvable:$true] %s36
      %s38 = sshll.u32 [#allocation5], 4
      %s39 = int_to_ptr.vmem [resolvable:$true] %s38
      %44 = dma.hbm_to_vmem [thread:$0]  %s37, 256, %s39, [#allocation6], 64, 64, 4
    $region9: #{tpu_custom_call.1} parent=1 // pred_fallthru
      _
    // Predicated region
    $region10: #{tpu_custom_call.1} parent=1 // pred_check
      _
    $region11: #{tpu_custom_call.1} parent=1 // pred_check_branch
      %46 = sbr.rel (0) target = $region13
    $region12: #{tpu_custom_call.1} parent=1 // pred_region
      %48 = vsyncadd [#allocation6], 0
      %s49 = sshll.u32 %s2, 4
      %s50 = int_to_ptr.hbm [resolvable:$true] %s49
      %s51 = sshll.u32 [#allocation7], 4
      %s52 = int_to_ptr.vmem [resolvable:$true] %s51
      %57 = dma.hbm_to_vmem [thread:$0]  %s50, 256, %s52, [#allocation6], 64, 64, 4
    $region13: #{tpu_custom_call.1} parent=1 // pred_fallthru
      _
    // Predicated region
    $region14: #{tpu_custom_call.1} parent=1 // pred_check
      _
    $region15: #{tpu_custom_call.1} parent=1 // pred_check_branch
      %59 = sbr.rel (0) target = $region17
    $region16: #{tpu_custom_call.1} parent=1 // pred_region
      %61 = vsyncadd [#allocation9], 0
      %s62 = sshll.u32 %s3, 4
      %s63 = int_to_ptr.hbm [resolvable:$true] %s62
      %s64 = sshll.u32 [#allocation8], 4
      %s65 = int_to_ptr.vmem [resolvable:$true] %s64
      %70 = dma.hbm_to_vmem [thread:$0]  %s63, 256, %s65, [#allocation9], 64, 64, 4
    $region17: #{tpu_custom_call.1} parent=1 // pred_fallthru
      _
    // Predicated region
    $region18: #{tpu_custom_call.1} parent=1 // pred_check
      _
    $region19: #{tpu_custom_call.1} parent=1 // pred_check_branch
      %72 = sbr.rel (0) target = $region21
    $region20: #{tpu_custom_call.1} parent=1 // pred_region
      %74 = vsyncadd [#allocation9], 0
      %s75 = sshll.u32 %s4, 4
      %s76 = int_to_ptr.hbm [resolvable:$true] %s75
      %s77 = sshll.u32 [#allocation10], 4
      %s78 = int_to_ptr.vmem [resolvable:$true] %s77
      %83 = dma.hbm_to_vmem [thread:$0]  %s76, 256, %s78, [#allocation9], 64, 64, 4
    $region21: #{tpu_custom_call.1} parent=1 // pred_fallthru
      _
    // Predicated region
    $region22: #{tpu_custom_call.1} parent=1 // pred_check
      _
    $region23: #{tpu_custom_call.1} parent=1 // pred_check_branch
      %85 = sbr.rel (0) target = $region25
    $region24: #{tpu_custom_call.1} parent=1 // pred_region
      %87 = vsyncadd [#allocation12], 0
      %s88 = sshll.u32 %s5, 4
      %s89 = int_to_ptr.hbm [resolvable:$true] %s88
      %s90 = sshll.u32 [#allocation11], 4
      %s91 = int_to_ptr.vmem [resolvable:$true] %s90
      %96 = dma.hbm_to_vmem [thread:$0]  %s89, 512, %s91, [#allocation12], 64, 64, 4
    $region25: #{tpu_custom_call.1} parent=1 // pred_fallthru
      _
    // Predicated region
    $region26: #{tpu_custom_call.1} parent=1 // pred_check
      _
    $region27: #{tpu_custom_call.1} parent=1 // pred_check_branch
      %98 = sbr.rel (0) target = $region29
    $region28: #{tpu_custom_call.1} parent=1 // pred_region
      _
    $region29: #{tpu_custom_call.1} parent=1 // pred_fallthru
      _
    // Predicated region
    $region30: #{tpu_custom_call.1} parent=1 // pred_check
      _
    $region31: #{tpu_custom_call.1} parent=1 // pred_check_branch
      %100 = sbr.rel (0) target = $region33
    $region32: #{tpu_custom_call.1} parent=1 // pred_region
      _
    $region33: #{tpu_custom_call.1} parent=1 // pred_fallthru
      _
    // Predicated region
    $region34: #{tpu_custom_call.1} parent=1 // pred_check
      _
    $region35: #{tpu_custom_call.1} parent=1 // pred_check_branch
      %102 = sbr.rel (0) target = $region37
    $region36: #{tpu_custom_call.1} parent=1 // pred_region
      _
    $region37: #{tpu_custom_call.1} parent=1 // pred_fallthru
      _
    // Predicated region
    $region38: #{tpu_custom_call.1} parent=1 // pred_check
      _
    $region39: #{tpu_custom_call.1} parent=1 // pred_check_branch
      %104 = sbr.rel (0) target = $region41
    $region40: #{tpu_custom_call.1} parent=1 // pred_region
      _
    $region41: #{tpu_custom_call.1} parent=1 // pred_fallthru
      _
    // Predicated region
    $region42: #{tpu_custom_call.1} parent=1 // pred_check
      _
    $region43: #{tpu_custom_call.1} parent=1 // pred_check_branch
      %106 = sbr.rel (0) target = $region45
    $region44: #{tpu_custom_call.1} parent=1 // pred_region
      _
    $region45: #{tpu_custom_call.1} parent=1 // pred_fallthru
      _
    // Predicated region
    $region46: #{tpu_custom_call.1} parent=1 // pred_check
      _
    $region47: #{tpu_custom_call.1} parent=1 // pred_check_branch
      %108 = sbr.rel (0) target = $region49
    $region48: #{tpu_custom_call.1} parent=1 // pred_region
      %110 = dma.done [#allocation3], 128
    $region49: #{tpu_custom_call.1} parent=1 // pred_fallthru
      _
    // Predicated region
    $region50: #{tpu_custom_call.1} parent=1 // pred_check
      _
    $region51: #{tpu_custom_call.1} parent=1 // pred_check_branch
      %112 = sbr.rel (0) target = $region53
    $region52: #{tpu_custom_call.1} parent=1 // pred_region
      %114 = dma.done [#allocation6], 256
    $region53: #{tpu_custom_call.1} parent=1 // pred_fallthru
      _
    // Predicated region
    $region54: #{tpu_custom_call.1} parent=1 // pred_check
      _
    $region55: #{tpu_custom_call.1} parent=1 // pred_check_branch
      %116 = sbr.rel (0) target = $region57
    $region56: #{tpu_custom_call.1} parent=1 // pred_region
      %118 = dma.done [#allocation6], 256
    $region57: #{tpu_custom_call.1} parent=1 // pred_fallthru
      _
    // Predicated region
    $region58: #{tpu_custom_call.1} parent=1 // pred_check
      _
    $region59: #{tpu_custom_call.1} parent=1 // pred_check_branch
      %120 = sbr.rel (0) target = $region61
    $region60: #{tpu_custom_call.1} parent=1 // pred_region
      %122 = dma.done [#allocation9], 256
    $region61: #{tpu_custom_call.1} parent=1 // pred_fallthru
      _
    // Predicated region
    $region62: #{tpu_custom_call.1} parent=1 // pred_check
      _
    $region63: #{tpu_custom_call.1} parent=1 // pred_check_branch
      %124 = sbr.rel (0) target = $region65
    $region64: #{tpu_custom_call.1} parent=1 // pred_region
      %126 = dma.done [#allocation9], 256
    $region65: #{tpu_custom_call.1} parent=1 // pred_fallthru
      _
    // Predicated region
    $region66: #{tpu_custom_call.1} parent=1 // pred_check
      _
    $region67: #{tpu_custom_call.1} parent=1 // pred_check_branch
      %128 = sbr.rel (0) target = $region69
    $region68: #{tpu_custom_call.1} parent=1 // pred_region
      %130 = dma.done [#allocation12], 512
    $region69: #{tpu_custom_call.1} parent=1 // pred_fallthru
      _
    %v132 = vld [vmem:[#allocation2] sm:$0xff]
    %v133 = vpack.c.bf16 %v132, %v132
    %v134 = vld [vmem:[#allocation5] sm:$0xf]
    %v135 = vld [vmem:[#allocation5 + $0x4] sm:$0xf]
    %v136 = vld [vmem:[#allocation5 + $0x8] sm:$0xf]
    %v137 = vld [vmem:[#allocation5 + $0xc] sm:$0xf]
    %v138 = vld [vmem:[%s6] sm:$0x1]
    %v140 = vperm.slane %v138, 0
    %v146 = vunpack.c.l.b16 %v134
    %v147 = vunpack.c.l.b16 %v135
    %v148 = vunpack.c.l.b16 %v136
    %v149 = vunpack.c.l.b16 %v137
    %v150 = vpack.c.b16 %v147, %v146
    %v151 = vpack.c.b16 %v149, %v148
    %vm154 = vcmask 261120
    %v156 = vsel %vm154, %v133, 0
    %158 = vmatpush.bf16.msra.mxu0 0
    %159 = vmatpush.bf16.msra.mxu0 0
    %160 = vmatpush.bf16.msra.mxu0 0
    %161 = vmatpush.bf16.msra.mxu0 0
    %162 = vmatpush.bf16.msra.mxu0 0
    %163 = vmatpush.bf16.msra.mxu0 0
    %164 = vmatpush.bf16.msra.mxu0 %v151
    %165 = vmatpush.bf16.msra.mxu0 %v150
    %166 = vmatmul.bf16.gmra.mxu0 %v156
    %v167 = vpop.f32.mrf.mxu0
    %v168 = vadd.f32 %v140, %v167
    %v169 = vpop.f32.mrf.mxu0
    %170 = vdwg.mxu0
    %v171 = vmax.f32 %v168, 0.0
    %v172 = vpack.c.bf16 %v171, %v171
    %v173 = vld [vmem:[#allocation7] sm:$0xf]
    %v174 = vld [vmem:[#allocation7 + $0x4] sm:$0xf]
    %v175 = vld [vmem:[#allocation7 + $0x8] sm:$0xf]
    %v176 = vld [vmem:[#allocation7 + $0xc] sm:$0xf]
    %v177 = vld [vmem:[%s7] sm:$0x1]
    %v179 = vperm.slane %v177, 0
    %v185 = vunpack.c.l.b16 %v173
    %v186 = vunpack.c.l.b16 %v174
    %v187 = vunpack.c.l.b16 %v175
    %v188 = vunpack.c.l.b16 %v176
    %v189 = vpack.c.b16 %v186, %v185
    %v190 = vpack.c.b16 %v188, %v187
    %v194 = vsel %vm154, %v172, 0
    %196 = vmatpush.bf16.msra.mxu0 0
    %197 = vmatpush.bf16.msra.mxu0 0
    %198 = vmatpush.bf16.msra.mxu0 0
    %199 = vmatpush.bf16.msra.mxu0 0
    %200 = vmatpush.bf16.msra.mxu0 0
    %201 = vmatpush.bf16.msra.mxu0 0
    %202 = vmatpush.bf16.msra.mxu0 %v190
    %203 = vmatpush.bf16.msra.mxu0 %v189
    %204 = vmatmul.bf16.gmra.mxu0 %v194
    %v205 = vpop.f32.mrf.mxu0
    %v206 = vadd.f32 %v179, %v205
    %v207 = vpop.f32.mrf.mxu0
    %208 = vdwg.mxu0
    %v209 = vmax.f32 %v206, 0.0
    %v210 = vpack.c.bf16 %v209, %v209
    %v211 = vld [vmem:[#allocation8] sm:$0xf]
    %v212 = vld [vmem:[#allocation8 + $0x4] sm:$0xf]
    %v213 = vld [vmem:[#allocation8 + $0x8] sm:$0xf]
    %v214 = vld [vmem:[#allocation8 + $0xc] sm:$0xf]
    %v215 = vld [vmem:[%s8] sm:$0x1]
    %v217 = vperm.slane %v215, 0
    %v223 = vunpack.c.l.b16 %v211
    %v224 = vunpack.c.l.b16 %v212
    %v225 = vunpack.c.l.b16 %v213
    %v226 = vunpack.c.l.b16 %v214
    %v227 = vpack.c.b16 %v224, %v223
    %v228 = vpack.c.b16 %v226, %v225
    %v232 = vsel %vm154, %v210, 0
    %234 = vmatpush.bf16.msra.mxu0 0
    %235 = vmatpush.bf16.msra.mxu0 0
    %236 = vmatpush.bf16.msra.mxu0 0
    %237 = vmatpush.bf16.msra.mxu0 0
    %238 = vmatpush.bf16.msra.mxu0 0
    %239 = vmatpush.bf16.msra.mxu0 0
    %240 = vmatpush.bf16.msra.mxu0 %v228
    %241 = vmatpush.bf16.msra.mxu0 %v227
    %242 = vmatmul.bf16.gmra.mxu0 %v232
    %v243 = vpop.f32.mrf.mxu0
    %v244 = vadd.f32 %v217, %v243
    %v245 = vpop.f32.mrf.mxu0
    %246 = vdwg.mxu0
    %v247 = vmax.f32 %v244, 0.0
    %v248 = vpack.c.bf16 %v247, %v247
    %v249 = vld [vmem:[#allocation10] sm:$0xf]
    %v250 = vld [vmem:[#allocation10 + $0x4] sm:$0xf]
    %v251 = vld [vmem:[#allocation10 + $0x8] sm:$0xf]
    %v252 = vld [vmem:[#allocation10 + $0xc] sm:$0xf]
    %v253 = vld [vmem:[%s9] sm:$0x1]
    %v255 = vperm.slane %v253, 0
    %v261 = vunpack.c.l.b16 %v249
    %v262 = vunpack.c.l.b16 %v250
    %v263 = vunpack.c.l.b16 %v251
    %v264 = vunpack.c.l.b16 %v252
    %v265 = vpack.c.b16 %v262, %v261
    %v266 = vpack.c.b16 %v264, %v263
    %v270 = vsel %vm154, %v248, 0
    %272 = vmatpush.bf16.msra.mxu0 0
    %273 = vmatpush.bf16.msra.mxu0 0
    %274 = vmatpush.bf16.msra.mxu0 0
    %275 = vmatpush.bf16.msra.mxu0 0
    %276 = vmatpush.bf16.msra.mxu0 0
    %277 = vmatpush.bf16.msra.mxu0 0
    %278 = vmatpush.bf16.msra.mxu0 %v266
    %279 = vmatpush.bf16.msra.mxu0 %v265
    %280 = vmatmul.bf16.gmra.mxu0 %v270
    %v281 = vpop.f32.mrf.mxu0
    %v282 = vadd.f32 %v255, %v281
    %v283 = vpop.f32.mrf.mxu0
    %284 = vdwg.mxu0
    %v285 = vmax.f32 %v282, 0.0
    %v286 = vpack.c.bf16 %v285, %v285
    %v287 = vld [vmem:[#allocation11] sm:$0xf]
    %v288 = vld [vmem:[#allocation11 + $0x4] sm:$0xf]
    %v289 = vld [vmem:[#allocation11 + $0x8] sm:$0xf]
    %v290 = vld [vmem:[#allocation11 + $0xc] sm:$0xf]
    %v291 = vld [vmem:[#allocation11 + $0x10] sm:$0xf]
    %v292 = vld [vmem:[#allocation11 + $0x14] sm:$0xf]
    %v293 = vld [vmem:[#allocation11 + $0x18] sm:$0xf]
    %v294 = vld [vmem:[#allocation11 + $0x1c] sm:$0xf]
    %v295 = vld [vmem:[%s10] sm:$0x1]
    %v297 = vperm.slane %v295, 0
    %v307 = vunpack.c.l.b16 %v287
    %v308 = vunpack.c.l.b16 %v288
    %v309 = vunpack.c.l.b16 %v289
    %v310 = vunpack.c.l.b16 %v290
    %v311 = vunpack.c.l.b16 %v291
    %v312 = vunpack.c.l.b16 %v292
    %v313 = vunpack.c.l.b16 %v293
    %v314 = vunpack.c.l.b16 %v294
    %v315 = vpack.c.b16 %v308, %v307
    %v316 = vpack.c.b16 %v310, %v309
    %v317 = vpack.c.b16 %v312, %v311
    %v318 = vpack.c.b16 %v314, %v313
    %vm323 = vcmask 523264
    %v325 = vsel %vm323, %v286, 0
    %327 = vmatpush.bf16.msra.mxu0 0
    %328 = vmatpush.bf16.msra.mxu0 0
    %329 = vmatpush.bf16.msra.mxu0 0
    %330 = vmatpush.bf16.msra.mxu0 0
    %331 = vmatpush.bf16.msra.mxu0 %v318
    %332 = vmatpush.bf16.msra.mxu0 %v317
    %333 = vmatpush.bf16.msra.mxu0 %v316
    %334 = vmatpush.bf16.msra.mxu0 %v315
    %335 = vmatmul.bf16.gmra.mxu0 %v325
    %v336 = vpop.f32.mrf.mxu0
    %v337 = vadd.f32 %v297, %v336
    %v338 = vpop.f32.mrf.mxu0
    %339 = vdwg.mxu0
    %vm340 = vcmask 64512
    %v341 = vsel %vm340, %v337, 0.0
    %342 = vadd.xlane.f32.xlu0 %v341
    %v343 = vpop.xlane.xlu0 %342
    %v344 = vmul.f32 %v343, 0.125
    %v345 = vsub.f32 %v337, %v344
    %347 = vset.pattern.permute.xlu0 8
    %348 = vperm.xlu0 %347, %v337
    %v349 = vpop.permute.xlu0 %348
    %v351 = vadd.f32 %v345, %v349
    %352 = vst.msk [vmem:[#allocation13] sm:$0xff] %vm340, %v351
    // Predicated region
    $region70: #{tpu_custom_call.1} parent=1 // pred_check
      _
    $region71: #{tpu_custom_call.1} parent=1 // pred_check_branch
      %354 = sbr.rel (0) target = $region73
    $region72: #{tpu_custom_call.1} parent=1 // pred_region
      %356 = vsyncadd [#allocation4], 0
      %s358 = sshll.u32 [#allocation13], 4
      %s359 = int_to_ptr.vmem [resolvable:$true] %s358
      %s360 = sshll.u32 %s11, 4
      %s361 = int_to_ptr.hbm [resolvable:$true] %s360
      %363 = dma.vmem_to_hbm [thread:$0]  %s359, 128, %s361, [#allocation4]
    $region73: #{tpu_custom_call.1} parent=1 // pred_fallthru
      _
    // Predicated region
    $region74: #{tpu_custom_call.1} parent=1 // pred_check
      _
    $region75: #{tpu_custom_call.1} parent=1 // pred_check_branch
      %365 = sbr.rel (0) target = $region77
    $region76: #{tpu_custom_call.1} parent=1 // pred_region
      %367 = dma.done [#allocation4], 128
    $region77: #{tpu_custom_call.1} parent=1 // pred_fallthru
      _
    %368 = vsyncpa [#allocation3], 1
    %369 = vsyncpa [#allocation6], 1
    %370 = vsyncpa [#allocation9], 1
    %371 = vsyncpa [#allocation12], 1
    %372 = vsyncpa [#allocation4], 1

</llo_original>
